<compile_context>
chip_gen: v7x
topology: tpu7x:2x2x1
jax: 0.10.0
libtpu: 0.0.40
codegen_flags: <defaults>
</compile_context>

<pallas_src>
import jax
import jax.numpy as jnp
from jax.experimental import pallas as pl
from jax.experimental.pallas import tpu as pltpu

_LANE = 128
_MAX_TILE_ELEMS = 64 * 1024  # elems per block (256 KiB for f32) — lane-dense, fits any VMEM


def _drop_path_kernel(scale_ref, x_ref, o_ref):
    # scale_ref: (B,) f32 in SMEM via scalar prefetch; one broadcast multiply per block.
    b = pl.program_id(0)
    s = scale_ref[b].astype(x_ref.dtype)
    o_ref[...] = x_ref[...] * s


def drop_path(x, drop_prob: float = 0.0, training: bool = False, key=None):
    """JAX/Pallas equivalent of the PyTorch drop_path()."""
    if drop_prob == 0.0 or not training:
        return x
    keep_prob = 1.0 - drop_prob
    B = x.shape[0]
    if key is None:
        key = jax.random.PRNGKey(0)  # caller should thread a fresh key per step

    # Per-sample Bernoulli(keep_prob) mask -> scale in {0, 1/keep_prob}, computed host-side.
    u = jax.random.uniform(key, (B,), dtype=jnp.float32)
    mask = jnp.floor(keep_prob + u)                       # 0.0 or 1.0
    scale = (mask * (1.0 / keep_prob)).astype(jnp.float32)

    # Flatten all non-batch dims into one lane-dense axis and pad to a tile multiple.
    orig_shape = x.shape
    L = 1
    for d in orig_shape[1:]:
        L *= int(d)

    L_lane = pl.cdiv(L, _LANE) * _LANE
    if L_lane <= _MAX_TILE_ELEMS:
        tile = L_lane
        L_pad = L_lane
    else:
        tile = _MAX_TILE_ELEMS
        L_pad = pl.cdiv(L_lane, tile) * tile

    x_flat = x.reshape(B, L)
    if L_pad != L:
        x_flat = jnp.pad(x_flat, ((0, 0), (0, L_pad - L)))
    x3 = x_flat.reshape(B, 1, L_pad)  # middle dim=1 keeps (8,128) rule via "full dim" escape

    n_tiles = L_pad // tile

    out = pl.pallas_call(
        _drop_path_kernel,
        out_shape=jax.ShapeDtypeStruct((B, 1, L_pad), x.dtype),
        grid_spec=pltpu.PrefetchScalarGridSpec(
            num_scalar_prefetch=1,                 # (B,) scale lands in SMEM
            grid=(B, n_tiles),
            in_specs=[pl.BlockSpec((1, 1, tile), lambda b, t, scale: (b, 0, t))],
            out_specs=pl.BlockSpec((1, 1, tile), lambda b, t, scale: (b, 0, t)),
        ),
        compiler_params=pltpu.CompilerParams(
            dimension_semantics=("parallel", "parallel"),  # no stateful PRNG -> fully parallel
        ),
    )(scale, x3)

    out = out.reshape(B, L_pad)
    if L_pad != L:
        out = out[:, :L]
    return out.reshape(orig_shape)


class DropPath:
    """Mirror of the nn.Module interface (no parameters)."""

    def __init__(self, drop_prob=None):
        self.drop_prob = 0.0 if drop_prob is None else float(drop_prob)
        self.training = True

    def __call__(self, x, key=None):
        return drop_path(x, self.drop_prob, self.training, key=key)


if __name__ == "__main__":
    key = jax.random.PRNGKey(0)
    kx, kd = jax.random.split(key)
    B, N, C = 2, 8, 32
    x = jax.random.normal(kx, (B, N, C), dtype=jnp.float32)

    drop_prob = 0.25
    keep_prob = 1.0 - drop_prob

    # training path (exercises the Pallas kernel)
    mod = DropPath(drop_prob=drop_prob)
    mod.training = True
    y = jax.block_until_ready(mod(x, key=kd))
    assert y.shape == x.shape and y.dtype == x.dtype
    # each sample must be either all-zero or exactly x / keep_prob
    for b in range(B):
        zeroed = bool(jnp.all(y[b] == 0.0))
        scaled = bool(jnp.allclose(y[b], x[b] / keep_prob, rtol=1e-5, atol=1e-6))
        assert zeroed or scaled, f"sample {b} is neither dropped nor scaled"

    # eval path (identity, no kernel needed)
    mod.training = False
    y_eval = jax.block_until_ready(mod(x))
    assert bool(jnp.all(y_eval == x))

    print("KERNEL_OK")
</pallas_src>

<mosaic_0001>
module attributes {stable_mosaic.version = 11 : i64} {
  func.func @_drop_path_kernel(%arg0: i32, %arg1: i32, %arg2: memref<2xf32, #tpu.memory_space<smem>>, %arg3: memref<1x1x256xf32, #tpu.memory_space<vmem>>, %arg4: memref<1x1x256xf32, #tpu.memory_space<vmem>>) attributes {dimension_semantics = [#tpu.dimension_semantics<parallel>, #tpu.dimension_semantics<parallel>], iteration_bounds = array<i64: 2, 1>, scalar_prefetch = 1 : i64, scratch_operands = 0 : i64, tpu.core_type = #tpu.core_type<tc>, window_params = [{transform_indices = @transform_0, window_bounds = array<i64: 1, 1, 256>}, {transform_indices = @transform_1, window_bounds = array<i64: 1, 1, 256>}]} {
    %0 = arith.index_cast %arg0 : i32 to index
    %1 = memref.load %arg2[%0] : memref<2xf32, #tpu.memory_space<smem>>
    %c0 = arith.constant 0 : index
    %c0_0 = arith.constant 0 : index
    %c0_1 = arith.constant 0 : index
    %2 = vector.load %arg3[%c0, %c0_0, %c0_1] : memref<1x1x256xf32, #tpu.memory_space<vmem>>, vector<1x1x256xf32>
    %3 = vector.broadcast %1 : f32 to vector<1x1x256xf32>
    %4 = arith.mulf %2, %3 : vector<1x1x256xf32>
    %c0_2 = arith.constant 0 : index
    %c0_3 = arith.constant 0 : index
    %c0_4 = arith.constant 0 : index
    %5 = vector.load %arg4[%c0_2, %c0_3, %c0_4] : memref<1x1x256xf32, #tpu.memory_space<vmem>>, vector<1x1x256xf32>
    tpu.vector_store %arg4[%c0_2, %c0_3, %c0_4], %4 {strides = array<i32>} : memref<1x1x256xf32, #tpu.memory_space<vmem>>, vector<1x1x256xf32>,
    return
  }
  func.func @transform_0(%arg0: i32, %arg1: i32, %arg2: memref<2xf32, #tpu.memory_space<smem>>) -> (i32, i32, i32) {
    %c0_i32 = arith.constant 0 : i32
    %c0_i32_0 = arith.constant 0 : i32
    return %arg0, %c0_i32, %arg1 : i32, i32, i32
  }
  func.func @transform_1(%arg0: i32, %arg1: i32, %arg2: memref<2xf32, #tpu.memory_space<smem>>) -> (i32, i32, i32) {
    %c0_i32 = arith.constant 0 : i32
    %c0_i32_0 = arith.constant 0 : i32
    return %arg0, %c0_i32, %arg1 : i32, i32, i32
  }
}

</mosaic_0001>

<llo_original>
// kernel: tpu_custom_call.1
$region0: #{tpu_custom_call.1}
  #allocation0 [shape = 'u32[]', space=smem, size = 0x4, offset = 0x4, fixed_abs, tag = 'smem constant byte address 0x4 - core index']
  #allocation1 [shape = 'u32[144,128]{1,0:T(1,128)}', space=vmem, size = 0x12000, scoped, tag = 'internal scratch']
  #allocation2 [shape = 's32[1]{0}', space=sflag, size = 0x4, scoped, tag = 'scoped memory for tpu_custom_call.1']
  #allocation3 [shape = 'u8[512]{0}', space=smem, size = 0x200, scoped, tag = 'prefetched SMEM operand 0']
  %s0 = inlined_call_operand.hbm [shape: f32[2], index: 0, kind: input, shape index: {}]
  %s1 = inlined_call_operand.hbm [shape: f32[2,1,256], index: 1, kind: input, shape index: {}]
  %s2 = inlined_call_operand.hbm [shape: f32[2,1,256], index: 2, kind: output, shape index: {}]
  %s3 = sld [smem:[#allocation0]]
  $region41: #{tpu_custom_call.1} parent=0
    _
  %s5 = ssub.s32 1, %s3
  %s6 = scalar_select 0, %s5, %s3
  %8 = dma.hbm_to_smem %s0, 16, [#allocation3], [#allocation2]
  %9 = dma.done [#allocation2], 16
  %10 = sfence
  $region1: #{tpu_custom_call.1} parent=0
    #allocation4 [shape = 'u8[2048]{0}', space=vmem, size = 0x800, scoped, tag = 'input window, operand 1']
    #allocation5 [shape = 's32[2]{0}', space=sflag, size = 0x8, scoped, tag = 'scoped memory for tpu_custom_call.1']
    #allocation6 [shape = 's32[2]{0}', space=sflag, size = 0x8, scoped, tag = 'scoped memory for tpu_custom_call.1']
    #allocation7 [shape = 'u8[2048]{0}', space=vmem, size = 0x800, scoped, tag = 'output window, operand 0']
    %11 = vsyncpa [#allocation5], 0
    %s12 = scalar_lea.sflag [#allocation5], 1
    %13 = vsyncpa %s12, 0
    %14 = vsyncpa [#allocation6], 0
    %s15 = scalar_lea.sflag [#allocation6], 1
    %16 = vsyncpa %s15, 0
    loop: start=0, step=1, limit=4
    $region2: #{tpu_custom_call.1} parent=1 // loop_pre_header
      _
    $region3: #{tpu_custom_call.1} parent=1 // loop_header
      %s18 = sphi 0, %s22
      %p19 = scmp.ge.s32.totalorder %s18, 4
      %s25 = sphi 0, %s37
      %s26 = sphi 0, %s33
      %s27 = sphi 0, %s25
      %s28 = sphi 0, %s26
      %s29 = sphi 0, %s27
      %s30 = sphi 0, %s28
      %s42 = sphi 0, %s44
      %s45 = sphi 0, %s42
      %s46 = sphi 0, %s45
      %s62 = sphi 0, %s46
      %s70 = sphi 0, %s72
      %s73 = sphi 0, %s70
      %s74 = sphi 0, %s73
      %s90 = sphi 0, %s74
    $region4: #{tpu_custom_call.1} parent=1 // loop_header_branch
      %21 = sbr.rel (%p19) target = $region8
    $region5: #{tpu_custom_call.1} parent=1 // loop_body
      %s23 = ssub.s32 %s18, 1
      %s24 = ssub.s32 %s18, 2
      %s31 = sadd.s32 1, %s26
      %p32 = scmp.ge.s32.totalorder %s31, 1
      %s33 = scalar_select %p32, 0, %s31
      %s34 = sadd.s32 1, %s25
      %s35 = scalar_select %p32, %s34, %s25
      %p36 = scmp.ge.s32.totalorder %s35, 2
      %s37 = scalar_select %p36, 0, %s35
      %s38 = ssub.s32 %s25, %s37
      %s39 = ssub.s32 %s26, %s33
      %s40 = sor.u32 %s38, %s39
      %p41 = scmp.eq.s32.totalorder %s40, 0
      %s43 = sadd.s32 %s42, 1
      %s44 = scalar_select %p41, %s42, %s43
      %p47 = pneg %p41
      %p48 = scmp.eq.s32.totalorder %s18, 1
      %p49 = por %p47, %p48
      %p50 = scmp.ne.s32.totalorder %s42, %s45
      %p51 = scmp.eq.s32.totalorder %s18, 0
      %p52 = por %p50, %p51
      %p53 = scmp.ne.s32.totalorder %s42, %s45
      %p54 = scmp.eq.s32.totalorder %s23, 1
      %p55 = por %p53, %p54
      %p56 = scmp.ne.s32.totalorder %s45, %s46
      %p57 = scmp.eq.s32.totalorder %s23, 0
      %p58 = por %p56, %p57
      %p59 = scmp.ne.s32.totalorder %s45, %s46
      %p60 = scmp.eq.s32.totalorder %s24, 1
      %p61 = por %p59, %p60
      %p63 = scmp.ne.s32.totalorder %s46, %s62
      %p64 = scmp.eq.s32.totalorder %s24, 0
      %p65 = por %p63, %p64
      %s66 = ssub.s32 %s25, %s37
      %s67 = ssub.s32 %s26, %s33
      %s68 = sor.u32 %s66, %s67
      %p69 = scmp.eq.s32.totalorder %s68, 0
      %s71 = sadd.s32 %s70, 1
      %s72 = scalar_select %p69, %s70, %s71
      %p75 = pneg %p69
      %p76 = scmp.eq.s32.totalorder %s18, 1
      %p77 = por %p75, %p76
      %p78 = scmp.ne.s32.totalorder %s70, %s73
      %p79 = scmp.eq.s32.totalorder %s18, 0
      %p80 = por %p78, %p79
      %p81 = scmp.ne.s32.totalorder %s70, %s73
      %p82 = scmp.eq.s32.totalorder %s23, 1
      %p83 = por %p81, %p82
      %p84 = scmp.ne.s32.totalorder %s73, %s74
      %p85 = scmp.eq.s32.totalorder %s23, 0
      %p86 = por %p84, %p85
      %p87 = scmp.ne.s32.totalorder %s73, %s74
      %p88 = scmp.eq.s32.totalorder %s24, 1
      %p89 = por %p87, %p88
      %p91 = scmp.ne.s32.totalorder %s74, %s90
      %p92 = scmp.eq.s32.totalorder %s24, 0
      %p93 = por %p91, %p92
      %p94 = scmp.le.s32.totalorder 1, %s18
      %p95 = scmp.lt.s32.totalorder %s18, 3
      %p96 = pnand %p94, %p95
      %p97 = pneg %p96
      // Predicated region
      $region9: #{tpu_custom_call.1} parent=5 // pred_check
        _
      $region10: #{tpu_custom_call.1} parent=5 // pred_check_branch
        %99 = sbr.rel (%p96) target = $region12
      $region11: #{tpu_custom_call.1} parent=5 // pred_region
        %s100 = ssub.s32 %s18, 1
      $region12: #{tpu_custom_call.1} parent=5 // pred_fallthru
        _
      %p101 = scmp.lt.s32.totalorder %s18, 2
      // Predicated region
      $region13: #{tpu_custom_call.1} parent=5 // pred_check
        %p102 = pneg %p101
      $region14: #{tpu_custom_call.1} parent=5 // pred_check_branch
        %104 = sbr.rel (%p102) target = $region16
      $region15: #{tpu_custom_call.1} parent=5 // pred_region
        // Predicated region
        $region17: #{tpu_custom_call.1} parent=15 // pred_check
          %p105 = pneg %p52
        $region18: #{tpu_custom_call.1} parent=15 // pred_check_branch
          %107 = sbr.rel (%p105) target = $region20
        $region19: #{tpu_custom_call.1} parent=15 // pred_region
          %s108 = sand.u32 %s42, 1
          %s109 = scalar_lea.sflag [#allocation5], %s108
          %s110 = sand.u32 %s42, 1
          %s111 = smul.addr %s110, 2
          %s112 = scalar_lea.vmem [#allocation4], %s111
          %s113 = smul.u32 2, %s26
          %s115 = ssub.s32 32, 32
          %116 = vsyncadd %s109, %s115
          %s117 = smul.addr %s25, 2
          %s118 = sadd.s32 %s113, %s117
          %s119 = smul.addr %s118, 16
          %s120 = scalar_lea.hbm %s1, %s119
          %s122 = sshll.u32 %s112, 4
          %s123 = int_to_ptr.vmem [resolvable:$true] %s122
          %125 = dma.hbm_to_vmem [thread:$0]  %s120, 32, %s123, %s109
        $region20: #{tpu_custom_call.1} parent=15 // pred_fallthru
          _
      $region16: #{tpu_custom_call.1} parent=5 // pred_fallthru
        _
      %p126 = scmp.le.s32.totalorder 1, %s18
      %p127 = scmp.lt.s32.totalorder %s18, 3
      %p128 = pnand %p126, %p127
      %p129 = pneg %p128
      // Predicated region
      $region21: #{tpu_custom_call.1} parent=5 // pred_check
        _
      $region22: #{tpu_custom_call.1} parent=5 // pred_check_branch
        %131 = sbr.rel (%p128) target = $region24
      $region23: #{tpu_custom_call.1} parent=5 // pred_region
        %s132 = ssub.s32 %s18, 1
        %s133 = sand.u32 %s45, 1
        %s134 = scalar_lea.sflag [#allocation5], %s133
        %s135 = sand.u32 %s45, 1
        %s136 = smul.addr %s135, 2
        %s137 = scalar_lea.vmem [#allocation4], %s136
        // Predicated region
        $region25: #{tpu_custom_call.1} parent=23 // pred_check
          %p138 = pneg %p58
        $region26: #{tpu_custom_call.1} parent=23 // pred_check_branch
          %140 = sbr.rel (%p138) target = $region28
        $region27: #{tpu_custom_call.1} parent=23 // pred_region
          %141 = dma.done %s134, 32
        $region28: #{tpu_custom_call.1} parent=23 // pred_fallthru
          _
        %s142 = sand.u32 %s45, 1
        %s143 = scalar_lea.sflag [#allocation5], %s142
        %s144 = sand.u32 %s45, 1
        %s145 = smul.addr %s144, 2
        %s146 = scalar_lea.vmem [#allocation4], %s145
        %p147 = pneg %p58
        %p148 = pneg %p55
        %p149 = pneg %p86
        %p150 = pneg %p83
        %s151 = sand.u32 %s73, 1
        %s152 = scalar_lea.sflag [#allocation6], %s151
        %s153 = sand.u32 %s73, 1
        %s154 = smul.addr %s153, 2
        %s155 = scalar_lea.vmem [#allocation7], %s154
        %s156 = smul.u32 2, %s28
        %s157 = smul.u32 2, %s28
        %s158 = sld [smem:[#allocation3 + %s27]]
        %v159 = vld [vmem:[%s137] sm:$0x3]
        %v160 = vstv %s158
        %v161 = vmul.f32 %v159, %v160
        %v162 = vlaneseq
        %vm163 = vcmp.ge.s32.totalorder %v162, 0
        %vm164 = vcmp.lt.s32.totalorder %v162, 256
        %vm165 = vmand %vm163, %vm164
        %166 = vst.msk [vmem:[%s155] sm:$0x3] %vm165, %v161
        %s167 = sand.u32 %s73, 1
        %s168 = scalar_lea.sflag [#allocation6], %s167
        %s169 = sand.u32 %s73, 1
        %s170 = smul.addr %s169, 2
        %s171 = scalar_lea.vmem [#allocation7], %s170
        // Predicated region
        $region29: #{tpu_custom_call.1} parent=23 // pred_check
          %p172 = pneg %p83
        $region30: #{tpu_custom_call.1} parent=23 // pred_check_branch
          %174 = sbr.rel (%p172) target = $region32
        $region31: #{tpu_custom_call.1} parent=23 // pred_region
          %s175 = smul.u32 2, %s28
          %s177 = ssub.s32 32, 32
          %178 = vsyncadd %s168, %s177
          %s179 = smul.addr %s27, 2
          %s180 = sadd.s32 %s175, %s179
          %s181 = smul.addr %s180, 16
          %s182 = scalar_lea.hbm %s2, %s181
          %s184 = sshll.u32 %s171, 4
          %s185 = int_to_ptr.vmem [resolvable:$true] %s184
          %187 = dma.vmem_to_hbm [thread:$0]  %s185, 32, %s182, %s168
        $region32: #{tpu_custom_call.1} parent=23 // pred_fallthru
          _
      $region24: #{tpu_custom_call.1} parent=5 // pred_fallthru
        _
      %p188 = scmp.le.s32.totalorder 2, %s18
      // Predicated region
      $region33: #{tpu_custom_call.1} parent=5 // pred_check
        %p189 = pneg %p188
      $region34: #{tpu_custom_call.1} parent=5 // pred_check_branch
        %191 = sbr.rel (%p189) target = $region36
      $region35: #{tpu_custom_call.1} parent=5 // pred_region
        %s192 = ssub.s32 %s18, 2
        // Predicated region
        $region37: #{tpu_custom_call.1} parent=35 // pred_check
          %p193 = pneg %p89
        $region38: #{tpu_custom_call.1} parent=35 // pred_check_branch
          %195 = sbr.rel (%p193) target = $region40
        $region39: #{tpu_custom_call.1} parent=35 // pred_region
          %s196 = sand.u32 %s74, 1
          %s197 = scalar_lea.sflag [#allocation6], %s196
          %s198 = sand.u32 %s74, 1
          %s199 = smul.addr %s198, 2
          %s200 = scalar_lea.vmem [#allocation7], %s199
          %201 = dma.done %s197, 32
        $region40: #{tpu_custom_call.1} parent=35 // pred_fallthru
          _
      $region36: #{tpu_custom_call.1} parent=5 // pred_fallthru
        _
    $region6: #{tpu_custom_call.1} parent=1 // loop_footer
      %s22 = sadd.s32 1, %s18
    $region7: #{tpu_custom_call.1} parent=1 // loop_footer_branch
      %17 = sbr.rel target = $region3
    $region8: #{tpu_custom_call.1} parent=1 // loop_exit
      _
    %202 = vsyncpa [#allocation5], 1
    %s203 = scalar_lea.sflag [#allocation5], 1
    %204 = vsyncpa %s203, 1
    %205 = vsyncpa [#allocation6], 1
    %s206 = scalar_lea.sflag [#allocation6], 1
    %207 = vsyncpa %s206, 1

</llo_original>
